<compile_context>
chip_gen: v7x
topology: tpu7x:2x2x1
jax: 0.10.0
libtpu: 0.0.40
codegen_flags: <defaults>
</compile_context>

<pallas_src>
import functools

import jax
import jax.numpy as jnp
from jax.experimental import pallas as pl
from jax.experimental.pallas import tpu as pltpu

LANE = 128      # pad feature dims to a multiple of the 128-wide lane axis
TILE_N = 128    # node row / column tile; double-buffered (TILE_N x TILE_N)
                # f32 A tiles + accumulators fit the default scoped VMEM on
                # v5e/v6e/v7x.


def _round_up(v, m):
    return (v + m - 1) // m * m


def _pad2d(x, rows, cols):
    r, c = x.shape
    return jnp.pad(x, ((0, rows - r), (0, cols - c)))


# ---------------------------------------------------------------------------
# Kernel bodies
# ---------------------------------------------------------------------------
def agg_then_transform_kernel(a_ref, f_ref, w_ref, b_ref, o_ref, acc_ref, *,
                              apply_relu):
    """out_tile = act( (sum_k A[i,k] @ F[k]) @ W + b ).

    Used when the (padded) input feature width is <= the (padded) output
    width: the O(N^2) A-contraction runs at the narrower width and the dense
    transform runs once per row tile in the finalize step.
    grid = (row_tiles, k_tiles).
    """
    k = pl.program_id(1)

    @pl.when(k == 0)
    def _():
        acc_ref[...] = jnp.zeros_like(acc_ref)

    acc_ref[...] += jnp.dot(a_ref[...], f_ref[...],
                            preferred_element_type=jnp.float32)

    @pl.when(k == pl.num_programs(1) - 1)
    def _():
        out = jnp.dot(acc_ref[...], w_ref[...],
                      preferred_element_type=jnp.float32) + b_ref[...]
        if apply_relu:
            out = jnp.maximum(out, 0.0)
        o_ref[...] = out.astype(o_ref.dtype)


def transform_kernel(f_ref, w_ref, o_ref):
    """out_tile = F[i] @ W  (row-tiled dense feature transform)."""
    o_ref[...] = jnp.dot(f_ref[...], w_ref[...],
                         preferred_element_type=jnp.float32).astype(o_ref.dtype)


def aggregate_bias_kernel(a_ref, f_ref, b_ref, o_ref, acc_ref, *, apply_relu):
    """out_tile = act( sum_k A[i,k] @ F[k] + b )  (F already transformed)."""
    k = pl.program_id(1)

    @pl.when(k == 0)
    def _():
        acc_ref[...] = jnp.zeros_like(acc_ref)

    acc_ref[...] += jnp.dot(a_ref[...], f_ref[...],
                            preferred_element_type=jnp.float32)

    @pl.when(k == pl.num_programs(1) - 1)
    def _():
        out = acc_ref[...] + b_ref[...]
        if apply_relu:
            out = jnp.maximum(out, 0.0)
        o_ref[...] = out.astype(o_ref.dtype)


# ---------------------------------------------------------------------------
# Per-layer wrapper (operates on already-padded, lane-dense arrays)
# ---------------------------------------------------------------------------
def _graph_conv_padded(a_pad, h_pad, w_pad, b_pad, *, apply_relu,
                       tile_n=TILE_N):
    n_pad = a_pad.shape[0]
    in_pad = w_pad.shape[0]
    out_pad = w_pad.shape[1]
    grid_rows = n_pad // tile_n
    grid_k = n_pad // tile_n
    sem = ("parallel", "arbitrary")   # row tiles independent; k is a reduction

    if in_pad <= out_pad:
        # Narrow (or equal) padded input: aggregate first (A @ H), transform
        # once per row tile at the end -- single fused kernel, no HBM
        # intermediate.
        kernel = functools.partial(agg_then_transform_kernel,
                                   apply_relu=apply_relu)
        return pl.pallas_call(
            kernel,
            out_shape=jax.ShapeDtypeStruct((n_pad, out_pad), jnp.float32),
            grid_spec=pltpu.PrefetchScalarGridSpec(
                num_scalar_prefetch=0,
                grid=(grid_rows, grid_k),
                in_specs=[
                    pl.BlockSpec((tile_n, tile_n), lambda i, k: (i, k)),   # A
                    pl.BlockSpec((tile_n, in_pad), lambda i, k: (k, 0)),   # H
                    pl.BlockSpec((in_pad, out_pad), lambda i, k: (0, 0)),  # W
                    pl.BlockSpec((1, out_pad), lambda i, k: (0, 0)),       # b
                ],
                out_specs=pl.BlockSpec((tile_n, out_pad), lambda i, k: (i, 0)),
                scratch_shapes=[pltpu.VMEM((tile_n, in_pad), jnp.float32)],
            ),
            compiler_params=pltpu.CompilerParams(dimension_semantics=sem),
        )(a_pad, h_pad, w_pad, b_pad)

    # Wide padded input, narrow padded output: transform first (H @ W), then
    # aggregate the narrow result so the O(N^2) contraction runs at out_pad.
    hw = pl.pallas_call(
        transform_kernel,
        out_shape=jax.ShapeDtypeStruct((n_pad, out_pad), jnp.float32),
        grid_spec=pltpu.PrefetchScalarGridSpec(
            num_scalar_prefetch=0,
            grid=(grid_rows,),
            in_specs=[
                pl.BlockSpec((tile_n, in_pad), lambda i: (i, 0)),   # H
                pl.BlockSpec((in_pad, out_pad), lambda i: (0, 0)),  # W
            ],
            out_specs=pl.BlockSpec((tile_n, out_pad), lambda i: (i, 0)),
        ),
        compiler_params=pltpu.CompilerParams(
            dimension_semantics=("parallel",)),
    )(h_pad, w_pad)

    kernel = functools.partial(aggregate_bias_kernel, apply_relu=apply_relu)
    return pl.pallas_call(
        kernel,
        out_shape=jax.ShapeDtypeStruct((n_pad, out_pad), jnp.float32),
        grid_spec=pltpu.PrefetchScalarGridSpec(
            num_scalar_prefetch=0,
            grid=(grid_rows, grid_k),
            in_specs=[
                pl.BlockSpec((tile_n, tile_n), lambda i, k: (i, k)),    # A
                pl.BlockSpec((tile_n, out_pad), lambda i, k: (k, 0)),   # H @ W
                pl.BlockSpec((1, out_pad), lambda i, k: (0, 0)),        # b
            ],
            out_specs=pl.BlockSpec((tile_n, out_pad), lambda i, k: (i, 0)),
            scratch_shapes=[pltpu.VMEM((tile_n, out_pad), jnp.float32)],
        ),
        compiler_params=pltpu.CompilerParams(dimension_semantics=sem),
    )(a_pad, hw, b_pad)


# ---------------------------------------------------------------------------
# Full GCN forward
# ---------------------------------------------------------------------------
def gcn_forward(a_norm, x, w1, b1, w2, b2, *, tile_n=TILE_N):
    n, in_size = x.shape
    out_size = w2.shape[1]

    n_pad = _round_up(n, tile_n)
    in_pad = _round_up(in_size, LANE)
    hid_pad = _round_up(w1.shape[1], LANE)
    out_pad = _round_up(out_size, LANE)

    # Zero-pad everything to lane/sublane-dense shapes (un-padded at the end).
    # TODO(synk): on v6e/v7x, casting a_pad / features to bfloat16 (keeping
    # preferred_element_type=f32 accumulation) would halve HBM traffic and
    # unlock peak bf16 MXU throughput; kept f32 here for exact parity with the
    # f32 reference.
    a_pad = _pad2d(a_norm.astype(jnp.float32), n_pad, n_pad)
    x_pad = _pad2d(x.astype(jnp.float32), n_pad, in_pad)
    w1_pad = _pad2d(w1, in_pad, hid_pad)
    w2_pad = _pad2d(w2, hid_pad, out_pad)
    b1_pad = _pad2d(b1.reshape(1, -1), 1, hid_pad)
    b2_pad = _pad2d(b2.reshape(1, -1), 1, out_pad)

    # Layer 1: GraphConv(in -> hid) + ReLU.
    h1 = _graph_conv_padded(a_pad, x_pad, w1_pad, b1_pad,
                            apply_relu=True, tile_n=tile_n)

    # TODO(synk): nn.Dropout(0.5) between layers is identity in eval mode;
    # training-mode stochastic masking (pltpu.prng_*) intentionally omitted.

    # Layer 2: GraphConv(hid -> out).
    out = _graph_conv_padded(a_pad, h1, w2_pad, b2_pad,
                             apply_relu=False, tile_n=tile_n)

    return out[:n, :out_size]


# ---------------------------------------------------------------------------
# Graph construction + reference
# ---------------------------------------------------------------------------
def build_normalized_adjacency(n):
    # Deterministic small graph: undirected ring + self-loops.
    # TODO(synk): for this ring graph the A-contraction could be two
    # pltpu.roll(H, +-1, axis=0) scaled adds instead of a dense matmul; kept
    # dense so the kernel works for arbitrary graphs.
    a = jnp.zeros((n, n), dtype=jnp.float32)
    idx = jnp.arange(n)
    a = a.at[idx, (idx + 1) % n].set(1.0)
    a = a.at[(idx + 1) % n, idx].set(1.0)
    a = a.at[idx, idx].set(1.0)
    deg = jnp.sum(a, axis=1)
    d_inv_sqrt = 1.0 / jnp.sqrt(deg)
    # norm='both': scale by src out-deg^-1/2 and dst in-deg^-1/2.
    return d_inv_sqrt[:, None] * a * d_inv_sqrt[None, :]


def gcn_reference(a_norm, x, w1, b1, w2, b2):
    h1 = jnp.maximum(a_norm @ (x @ w1) + b1, 0.0)
    return a_norm @ (h1 @ w2) + b2


def _make_params(key, in_size, hid_size, out_size):
    k_x, k_w1, k_w2 = jax.random.split(key, 3)
    # Deterministic Glorot-uniform weights (DGL GraphConv init), zero biases.
    lim1 = (6.0 / (in_size + hid_size)) ** 0.5
    w1 = jax.random.uniform(k_w1, (in_size, hid_size), jnp.float32, -lim1, lim1)
    b1 = jnp.zeros((hid_size,), jnp.float32)
    lim2 = (6.0 / (hid_size + out_size)) ** 0.5
    w2 = jax.random.uniform(k_w2, (hid_size, out_size), jnp.float32, -lim2, lim2)
    b2 = jnp.zeros((out_size,), jnp.float32)
    return k_x, w1, b1, w2, b2


if __name__ == "__main__":
    key = jax.random.PRNGKey(0)
    fwd = jax.jit(gcn_forward)

    # Config 1 (primary): small GCN -- both layers take the fused
    # aggregate-then-transform path.
    N, IN_SIZE, HID_SIZE, OUT_SIZE = 16, 8, 32, 4
    k_x, w1, b1, w2, b2 = _make_params(key, IN_SIZE, HID_SIZE, OUT_SIZE)
    x = jax.random.normal(k_x, (N, IN_SIZE), dtype=jnp.float32)
    a_norm = build_normalized_adjacency(N)
    out = jax.block_until_ready(fwd(a_norm, x, w1, b1, w2, b2))
    ref = gcn_reference(a_norm, x, w1, b1, w2, b2)
    assert out.shape == (N, OUT_SIZE)
    assert jnp.allclose(out, ref, atol=1e-5, rtol=1e-5)

    # Config 2: wide input (padded 256 > 128) -- exercises the transform-first
    # two-pass path on layer 1.
    N2, IN2, HID2, OUT2 = 16, 200, 32, 4
    k_x2, w1b, b1b, w2b, b2b = _make_params(jax.random.PRNGKey(1), IN2, HID2, OUT2)
    x2 = jax.random.normal(k_x2, (N2, IN2), dtype=jnp.float32)
    a2 = build_normalized_adjacency(N2)
    out2 = jax.block_until_ready(fwd(a2, x2, w1b, b1b, w2b, b2b))
    ref2 = gcn_reference(a2, x2, w1b, b1b, w2b, b2b)
    assert out2.shape == (N2, OUT2)
    assert jnp.allclose(out2, ref2, atol=1e-4, rtol=1e-4)

    print("KERNEL_OK")
</pallas_src>

<mosaic_0001>
module attributes {stable_mosaic.version = 11 : i64} {
  func.func @agg_then_transform_kernel(%arg0: i32, %arg1: i32, %arg2: memref<128x128xf32, #tpu.memory_space<vmem>>, %arg3: memref<128x128xf32, #tpu.memory_space<vmem>>, %arg4: memref<128x128xf32, #tpu.memory_space<vmem>>, %arg5: memref<1x128xf32, #tpu.memory_space<vmem>>, %arg6: memref<128x128xf32, #tpu.memory_space<vmem>>, %arg7: memref<128x128xf32, #tpu.memory_space<vmem>>) attributes {dimension_semantics = [#tpu.dimension_semantics<parallel>, #tpu.dimension_semantics<arbitrary>], iteration_bounds = array<i64: 1, 1>, scalar_prefetch = 0 : i64, scratch_operands = 1 : i64, tpu.core_type = #tpu.core_type<tc>, window_params = [{transform_indices = @transform_0, window_bounds = array<i64: 128, 128>}, {transform_indices = @transform_1, window_bounds = array<i64: 128, 128>}, {pipeline_mode = #tpu.pipeline_mode<synchronous>, transform_indices = @transform_2, window_bounds = array<i64: 128, 128>}, {pipeline_mode = #tpu.pipeline_mode<synchronous>, transform_indices = @transform_3, window_bounds = array<i64: 1, 128>}, {transform_indices = @transform_4, window_bounds = array<i64: 128, 128>}]} {
    %c0_i32 = arith.constant 0 : i32
    %0 = arith.cmpi eq, %arg1, %c0_i32 : i32
    %1 = arith.extui %0 : i1 to i32
    %c0_i32_0 = arith.constant 0 : i32
    %2 = arith.cmpi ne, %1, %c0_i32_0 : i32
    scf.if %2 {
      %cst_10 = arith.constant 0.000000e+00 : f32
      %12 = vector.broadcast %cst_10 : f32 to vector<128x128xf32>
      %c0_11 = arith.constant 0 : index
      %c0_12 = arith.constant 0 : index
      %13 = vector.load %arg7[%c0_11, %c0_12] : memref<128x128xf32, #tpu.memory_space<vmem>>, vector<128x128xf32>
      tpu.vector_store %arg7[%c0_11, %c0_12], %12 {strides = array<i32>} : memref<128x128xf32, #tpu.memory_space<vmem>>, vector<128x128xf32>,
    } else {
    }
    %c0 = arith.constant 0 : index
    %c0_1 = arith.constant 0 : index
    %3 = vector.load %arg7[%c0, %c0_1] : memref<128x128xf32, #tpu.memory_space<vmem>>, vector<128x128xf32>
    %c0_2 = arith.constant 0 : index
    %c0_3 = arith.constant 0 : index
    %4 = vector.load %arg2[%c0_2, %c0_3] : memref<128x128xf32, #tpu.memory_space<vmem>>, vector<128x128xf32>
    %c0_4 = arith.constant 0 : index
    %c0_5 = arith.constant 0 : index
    %5 = vector.load %arg3[%c0_4, %c0_5] : memref<128x128xf32, #tpu.memory_space<vmem>>, vector<128x128xf32>
    %cst = arith.constant dense<0.000000e+00> : vector<128x128xf32>
    %6 = tpu.matmul %4, %5, %cst {dimension_numbers = #tpu.dot_dimension_numbers<[1], [0], [0], [1], [0, 0, 1, 1], [], []>} : vector<128x128xf32>, vector<128x128xf32>, vector<128x128xf32> -> vector<128x128xf32>
    %7 = arith.addf %3, %6 : vector<128x128xf32>
    %c0_6 = arith.constant 0 : index
    %c0_7 = arith.constant 0 : index
    %8 = vector.load %arg7[%c0_6, %c0_7] : memref<128x128xf32, #tpu.memory_space<vmem>>, vector<128x128xf32>
    tpu.vector_store %arg7[%c0_6, %c0_7], %7 {strides = array<i32>} : memref<128x128xf32, #tpu.memory_space<vmem>>, vector<128x128xf32>,
    %c0_i32_8 = arith.constant 0 : i32
    %9 = arith.cmpi eq, %arg1, %c0_i32_8 : i32
    %10 = arith.extui %9 : i1 to i32
    %c0_i32_9 = arith.constant 0 : i32
    %11 = arith.cmpi ne, %10, %c0_i32_9 : i32
    scf.if %11 {
      %c0_10 = arith.constant 0 : index
      %c0_11 = arith.constant 0 : index
      %12 = vector.load %arg7[%c0_10, %c0_11] : memref<128x128xf32, #tpu.memory_space<vmem>>, vector<128x128xf32>
      %c0_12 = arith.constant 0 : index
      %c0_13 = arith.constant 0 : index
      %13 = vector.load %arg4[%c0_12, %c0_13] : memref<128x128xf32, #tpu.memory_space<vmem>>, vector<128x128xf32>
      %cst_14 = arith.constant dense<0.000000e+00> : vector<128x128xf32>
      %14 = tpu.matmul %12, %13, %cst_14 {dimension_numbers = #tpu.dot_dimension_numbers<[1], [0], [0], [1], [0, 0, 1, 1], [], []>} : vector<128x128xf32>, vector<128x128xf32>, vector<128x128xf32> -> vector<128x128xf32>
      %c0_15 = arith.constant 0 : index
      %c0_16 = arith.constant 0 : index
      %15 = vector.load %arg5[%c0_15, %c0_16] : memref<1x128xf32, #tpu.memory_space<vmem>>, vector<1x128xf32>
      %16 = vector.broadcast %15 : vector<1x128xf32> to vector<128x128xf32>
      %17 = arith.addf %14, %16 : vector<128x128xf32>
      %cst_17 = arith.constant 0.000000e+00 : f32
      %18 = vector.broadcast %cst_17 : f32 to vector<128x128xf32>
      %19 = arith.maximumf %17, %18 : vector<128x128xf32>
      %c0_18 = arith.constant 0 : index
      %c0_19 = arith.constant 0 : index
      %20 = vector.load %arg6[%c0_18, %c0_19] : memref<128x128xf32, #tpu.memory_space<vmem>>, vector<128x128xf32>
      tpu.vector_store %arg6[%c0_18, %c0_19], %19 {strides = array<i32>} : memref<128x128xf32, #tpu.memory_space<vmem>>, vector<128x128xf32>,
    } else {
    }
    return
  }
  func.func @transform_0(%arg0: i32, %arg1: i32) -> (i32, i32) {
    %c0_i32 = arith.constant 0 : i32
    return %arg0, %arg1 : i32, i32
  }
  func.func @transform_1(%arg0: i32, %arg1: i32) -> (i32, i32) {
    %c0_i32 = arith.constant 0 : i32
    %c0_i32_0 = arith.constant 0 : i32
    return %arg1, %c0_i32 : i32, i32
  }
  func.func @transform_2(%arg0: i32, %arg1: i32) -> (i32, i32) {
    %c0_i32 = arith.constant 0 : i32
    %c0_i32_0 = arith.constant 0 : i32
    %c0_i32_1 = arith.constant 0 : i32
    return %c0_i32, %c0_i32_0 : i32, i32
  }
  func.func @transform_3(%arg0: i32, %arg1: i32) -> (i32, i32) {
    %c0_i32 = arith.constant 0 : i32
    %c0_i32_0 = arith.constant 0 : i32
    %c0_i32_1 = arith.constant 0 : i32
    return %c0_i32, %c0_i32_0 : i32, i32
  }
  func.func @transform_4(%arg0: i32, %arg1: i32) -> (i32, i32) {
    %c0_i32 = arith.constant 0 : i32
    %c0_i32_0 = arith.constant 0 : i32
    return %arg0, %c0_i32 : i32, i32
  }
}

module attributes {stable_mosaic.version = 11 : i64} {
  func.func @agg_then_transform_kernel(%arg0: i32, %arg1: i32, %arg2: memref<128x128xf32, #tpu.memory_space<vmem>>, %arg3: memref<128x128xf32, #tpu.memory_space<vmem>>, %arg4: memref<128x128xf32, #tpu.memory_space<vmem>>, %arg5: memref<1x128xf32, #tpu.memory_space<vmem>>, %arg6: memref<128x128xf32, #tpu.memory_space<vmem>>, %arg7: memref<128x128xf32, #tpu.memory_space<vmem>>) attributes {dimension_semantics = [#tpu.dimension_semantics<parallel>, #tpu.dimension_semantics<arbitrary>], iteration_bounds = array<i64: 1, 1>, scalar_prefetch = 0 : i64, scratch_operands = 1 : i64, tpu.core_type = #tpu.core_type<tc>, window_params = [{transform_indices = @transform_0, window_bounds = array<i64: 128, 128>}, {transform_indices = @transform_1, window_bounds = array<i64: 128, 128>}, {pipeline_mode = #tpu.pipeline_mode<synchronous>, transform_indices = @transform_2, window_bounds = array<i64: 128, 128>}, {pipeline_mode = #tpu.pipeline_mode<synchronous>, transform_indices = @transform_3, window_bounds = array<i64: 1, 128>}, {transform_indices = @transform_4, window_bounds = array<i64: 128, 128>}]} {
    %c0_i32 = arith.constant 0 : i32
    %0 = arith.cmpi eq, %arg1, %c0_i32 : i32
    %1 = arith.extui %0 : i1 to i32
    %c0_i32_0 = arith.constant 0 : i32
    %2 = arith.cmpi ne, %1, %c0_i32_0 : i32
    scf.if %2 {
      %cst_10 = arith.constant 0.000000e+00 : f32
      %12 = vector.broadcast %cst_10 : f32 to vector<128x128xf32>
      %c0_11 = arith.constant 0 : index
      %c0_12 = arith.constant 0 : index
      %13 = vector.load %arg7[%c0_11, %c0_12] : memref<128x128xf32, #tpu.memory_space<vmem>>, vector<128x128xf32>
      tpu.vector_store %arg7[%c0_11, %c0_12], %12 {strides = array<i32>} : memref<128x128xf32, #tpu.memory_space<vmem>>, vector<128x128xf32>,
    } else {
    }
    %c0 = arith.constant 0 : index
    %c0_1 = arith.constant 0 : index
    %3 = vector.load %arg7[%c0, %c0_1] : memref<128x128xf32, #tpu.memory_space<vmem>>, vector<128x128xf32>
    %c0_2 = arith.constant 0 : index
    %c0_3 = arith.constant 0 : index
    %4 = vector.load %arg2[%c0_2, %c0_3] : memref<128x128xf32, #tpu.memory_space<vmem>>, vector<128x128xf32>
    %c0_4 = arith.constant 0 : index
    %c0_5 = arith.constant 0 : index
    %5 = vector.load %arg3[%c0_4, %c0_5] : memref<128x128xf32, #tpu.memory_space<vmem>>, vector<128x128xf32>
    %cst = arith.constant dense<0.000000e+00> : vector<128x128xf32>
    %6 = tpu.matmul %4, %5, %cst {dimension_numbers = #tpu.dot_dimension_numbers<[1], [0], [0], [1], [0, 0, 1, 1], [], []>} : vector<128x128xf32>, vector<128x128xf32>, vector<128x128xf32> -> vector<128x128xf32>
    %7 = arith.addf %3, %6 : vector<128x128xf32>
    %c0_6 = arith.constant 0 : index
    %c0_7 = arith.constant 0 : index
    %8 = vector.load %arg7[%c0_6, %c0_7] : memref<128x128xf32, #tpu.memory_space<vmem>>, vector<128x128xf32>
    tpu.vector_store %arg7[%c0_6, %c0_7], %7 {strides = array<i32>} : memref<128x128xf32, #tpu.memory_space<vmem>>, vector<128x128xf32>,
    %c0_i32_8 = arith.constant 0 : i32
    %9 = arith.cmpi eq, %arg1, %c0_i32_8 : i32
    %10 = arith.extui %9 : i1 to i32
    %c0_i32_9 = arith.constant 0 : i32
    %11 = arith.cmpi ne, %10, %c0_i32_9 : i32
    scf.if %11 {
      %c0_10 = arith.constant 0 : index
      %c0_11 = arith.constant 0 : index
      %12 = vector.load %arg7[%c0_10, %c0_11] : memref<128x128xf32, #tpu.memory_space<vmem>>, vector<128x128xf32>
      %c0_12 = arith.constant 0 : index
      %c0_13 = arith.constant 0 : index
      %13 = vector.load %arg4[%c0_12, %c0_13] : memref<128x128xf32, #tpu.memory_space<vmem>>, vector<128x128xf32>
      %cst_14 = arith.constant dense<0.000000e+00> : vector<128x128xf32>
      %14 = tpu.matmul %12, %13, %cst_14 {dimension_numbers = #tpu.dot_dimension_numbers<[1], [0], [0], [1], [0, 0, 1, 1], [], []>} : vector<128x128xf32>, vector<128x128xf32>, vector<128x128xf32> -> vector<128x128xf32>
      %c0_15 = arith.constant 0 : index
      %c0_16 = arith.constant 0 : index
      %15 = vector.load %arg5[%c0_15, %c0_16] : memref<1x128xf32, #tpu.memory_space<vmem>>, vector<1x128xf32>
      %16 = vector.broadcast %15 : vector<1x128xf32> to vector<128x128xf32>
      %17 = arith.addf %14, %16 : vector<128x128xf32>
      %c0_17 = arith.constant 0 : index
      %c0_18 = arith.constant 0 : index
      %18 = vector.load %arg6[%c0_17, %c0_18] : memref<128x128xf32, #tpu.memory_space<vmem>>, vector<128x128xf32>
      tpu.vector_store %arg6[%c0_17, %c0_18], %17 {strides = array<i32>} : memref<128x128xf32, #tpu.memory_space<vmem>>, vector<128x128xf32>,
    } else {
    }
    return
  }
  func.func @transform_0(%arg0: i32, %arg1: i32) -> (i32, i32) {
    %c0_i32 = arith.constant 0 : i32
    return %arg0, %arg1 : i32, i32
  }
  func.func @transform_1(%arg0: i32, %arg1: i32) -> (i32, i32) {
    %c0_i32 = arith.constant 0 : i32
    %c0_i32_0 = arith.constant 0 : i32
    return %arg1, %c0_i32 : i32, i32
  }
  func.func @transform_2(%arg0: i32, %arg1: i32) -> (i32, i32) {
    %c0_i32 = arith.constant 0 : i32
    %c0_i32_0 = arith.constant 0 : i32
    %c0_i32_1 = arith.constant 0 : i32
    return %c0_i32, %c0_i32_0 : i32, i32
  }
  func.func @transform_3(%arg0: i32, %arg1: i32) -> (i32, i32) {
    %c0_i32 = arith.constant 0 : i32
    %c0_i32_0 = arith.constant 0 : i32
    %c0_i32_1 = arith.constant 0 : i32
    return %c0_i32, %c0_i32_0 : i32, i32
  }
  func.func @transform_4(%arg0: i32, %arg1: i32) -> (i32, i32) {
    %c0_i32 = arith.constant 0 : i32
    %c0_i32_0 = arith.constant 0 : i32
    return %arg0, %c0_i32 : i32, i32
  }
}

</mosaic_0001>

<llo_original>
// kernel: gcn_forward.3
$region0: #{gcn_forward.3}
  #allocation0 [shape = 'u32[]', space=smem, size = 0x4, offset = 0x4, fixed_abs, tag = 'smem constant byte address 0x4 - core index']
  #allocation1 [shape = 'u32[144,128]{1,0:T(1,128)}', space=vmem, size = 0x12000, scoped, tag = 'internal scratch']
  #allocation2 [shape = 'f32[128,128]{1,0:T(8,128)}', space=vmem, size = 0x10000, scoped, tag = 'scratch operand']
  %s0 = inlined_call_operand.vmem [shape: f32[128,128], index: 0, kind: input, shape index: {}]
  %s1 = inlined_call_operand.vmem [shape: f32[128,128], index: 1, kind: input, shape index: {}]
  %s2 = inlined_call_operand.vmem [shape: f32[128,128], index: 2, kind: input, shape index: {}]
  %s3 = inlined_call_operand.vmem [shape: f32[1,128], index: 3, kind: input, shape index: {}]
  %s4 = inlined_call_operand.vmem [shape: f32[128,128], index: 4, kind: output, shape index: {}]
  %s5 = sld [smem:[#allocation0]]
  $region34: #{gcn_forward.3} parent=0
    _
  %s7 = ssub.s32 1, %s5
  %s8 = scalar_select 0, %s7, %s5
  // Predicated region
  $region2: #{gcn_forward.3} parent=0 // pred_check
    _
  $region3: #{gcn_forward.3} parent=0 // pred_check_branch
    %10 = sbr.rel (0) target = $region5
  $region4: #{gcn_forward.3} parent=0 // pred_region
    _
  $region5: #{gcn_forward.3} parent=0 // pred_fallthru
    _
  // Predicated region
  $region6: #{gcn_forward.3} parent=0 // pred_check
    _
  $region7: #{gcn_forward.3} parent=0 // pred_check_branch
    %12 = sbr.rel (0) target = $region9
  $region8: #{gcn_forward.3} parent=0 // pred_region
    _
  $region9: #{gcn_forward.3} parent=0 // pred_fallthru
    _
  // Predicated region
  $region10: #{gcn_forward.3} parent=0 // pred_check
    _
  $region11: #{gcn_forward.3} parent=0 // pred_check_branch
    %14 = sbr.rel (0) target = $region13
  $region12: #{gcn_forward.3} parent=0 // pred_region
    _
  $region13: #{gcn_forward.3} parent=0 // pred_fallthru
    _
  // Predicated region
  $region14: #{gcn_forward.3} parent=0 // pred_check
    _
  $region15: #{gcn_forward.3} parent=0 // pred_check_branch
    %16 = sbr.rel (0) target = $region17
  $region16: #{gcn_forward.3} parent=0 // pred_region
    _
  $region17: #{gcn_forward.3} parent=0 // pred_fallthru
    _
  %p17 = scmp.eq.s32.totalorder 0, 0
  // Predicated region
  $region18: #{gcn_forward.3} parent=0 // pred_check
    %p18 = pneg %p17
  $region19: #{gcn_forward.3} parent=0 // pred_check_branch
    %20 = sbr.rel (%p18) target = $region21
  $region20: #{gcn_forward.3} parent=0 // pred_region
    %21 = vst [vmem:[#allocation2] sm:$0xff] 0.0
    %22 = vst [vmem:[#allocation2 + $0x8] sm:$0xff] 0.0
    %23 = vst [vmem:[#allocation2 + $0x10] sm:$0xff] 0.0
    %24 = vst [vmem:[#allocation2 + $0x18] sm:$0xff] 0.0
    %25 = vst [vmem:[#allocation2 + $0x20] sm:$0xff] 0.0
    %26 = vst [vmem:[#allocation2 + $0x28] sm:$0xff] 0.0
    %27 = vst [vmem:[#allocation2 + $0x30] sm:$0xff] 0.0
    %28 = vst [vmem:[#allocation2 + $0x38] sm:$0xff] 0.0
    %29 = vst [vmem:[#allocation2 + $0x40] sm:$0xff] 0.0
    %30 = vst [vmem:[#allocation2 + $0x48] sm:$0xff] 0.0
    %31 = vst [vmem:[#allocation2 + $0x50] sm:$0xff] 0.0
    %32 = vst [vmem:[#allocation2 + $0x58] sm:$0xff] 0.0
    %33 = vst [vmem:[#allocation2 + $0x60] sm:$0xff] 0.0
    %34 = vst [vmem:[#allocation2 + $0x68] sm:$0xff] 0.0
    %35 = vst [vmem:[#allocation2 + $0x70] sm:$0xff] 0.0
    %36 = vst [vmem:[#allocation2 + $0x78] sm:$0xff] 0.0
  $region21: #{gcn_forward.3} parent=0 // pred_fallthru
    _
  %v37 = vld [vmem:[#allocation2] sm:$0xff]
  %v38 = vld [vmem:[#allocation2 + $0x8] sm:$0xff]
  %v39 = vld [vmem:[#allocation2 + $0x10] sm:$0xff]
  %v40 = vld [vmem:[#allocation2 + $0x18] sm:$0xff]
  %v41 = vld [vmem:[#allocation2 + $0x20] sm:$0xff]
  %v42 = vld [vmem:[#allocation2 + $0x28] sm:$0xff]
  %v43 = vld [vmem:[#allocation2 + $0x30] sm:$0xff]
  %v44 = vld [vmem:[#allocation2 + $0x38] sm:$0xff]
  %v45 = vld [vmem:[#allocation2 + $0x40] sm:$0xff]
  %v46 = vld [vmem:[#allocation2 + $0x48] sm:$0xff]
  %v47 = vld [vmem:[#allocation2 + $0x50] sm:$0xff]
  %v48 = vld [vmem:[#allocation2 + $0x58] sm:$0xff]
  %v49 = vld [vmem:[#allocation2 + $0x60] sm:$0xff]
  %v50 = vld [vmem:[#allocation2 + $0x68] sm:$0xff]
  %v51 = vld [vmem:[#allocation2 + $0x70] sm:$0xff]
  %v52 = vld [vmem:[#allocation2 + $0x78] sm:$0xff]
  %v53 = vld [vmem:[%s0] sm:$0xff]
  %v54 = vld [vmem:[%s0 + $0x8] sm:$0xff]
  %v55 = vld [vmem:[%s0 + $0x10] sm:$0xff]
  %v56 = vld [vmem:[%s0 + $0x18] sm:$0xff]
  %v57 = vld [vmem:[%s0 + $0x20] sm:$0xff]
  %v58 = vld [vmem:[%s0 + $0x28] sm:$0xff]
  %v59 = vld [vmem:[%s0 + $0x30] sm:$0xff]
  %v60 = vld [vmem:[%s0 + $0x38] sm:$0xff]
  %v61 = vld [vmem:[%s0 + $0x40] sm:$0xff]
  %v62 = vld [vmem:[%s0 + $0x48] sm:$0xff]
  %v63 = vld [vmem:[%s0 + $0x50] sm:$0xff]
  %v64 = vld [vmem:[%s0 + $0x58] sm:$0xff]
  %v65 = vld [vmem:[%s0 + $0x60] sm:$0xff]
  %v66 = vld [vmem:[%s0 + $0x68] sm:$0xff]
  %v67 = vld [vmem:[%s0 + $0x70] sm:$0xff]
  %v68 = vld [vmem:[%s0 + $0x78] sm:$0xff]
  %v69 = vld [vmem:[%s1] sm:$0xff]
  %v70 = vld [vmem:[%s1 + $0x8] sm:$0xff]
  %v71 = vld [vmem:[%s1 + $0x10] sm:$0xff]
  %v72 = vld [vmem:[%s1 + $0x18] sm:$0xff]
  %v73 = vld [vmem:[%s1 + $0x20] sm:$0xff]
  %v74 = vld [vmem:[%s1 + $0x28] sm:$0xff]
  %v75 = vld [vmem:[%s1 + $0x30] sm:$0xff]
  %v76 = vld [vmem:[%s1 + $0x38] sm:$0xff]
  %v77 = vld [vmem:[%s1 + $0x40] sm:$0xff]
  %v78 = vld [vmem:[%s1 + $0x48] sm:$0xff]
  %v79 = vld [vmem:[%s1 + $0x50] sm:$0xff]
  %v80 = vld [vmem:[%s1 + $0x58] sm:$0xff]
  %v81 = vld [vmem:[%s1 + $0x60] sm:$0xff]
  %v82 = vld [vmem:[%s1 + $0x68] sm:$0xff]
  %v83 = vld [vmem:[%s1 + $0x70] sm:$0xff]
  %v84 = vld [vmem:[%s1 + $0x78] sm:$0xff]
  %85 = vmatprep.subr.mxu0 0.0
  %86 = vmatpush1.msra.mxu0 %v69
  %87 = vmatprep.subr.mxu0 0.0
  %88 = vmatpush1.msra.mxu0 %v70
  %89 = vmatprep.subr.mxu0 0.0
  %90 = vmatpush1.msra.mxu0 %v71
  %91 = vmatprep.subr.mxu0 0.0
  %92 = vmatpush1.msra.mxu0 %v72
  %93 = vmatprep.subr.mxu0 0.0
  %94 = vmatpush1.msra.mxu0 %v73
  %95 = vmatprep.subr.mxu0 0.0
  %96 = vmatpush1.msra.mxu0 %v74
  %97 = vmatprep.subr.mxu0 0.0
  %98 = vmatpush1.msra.mxu0 %v75
  %99 = vmatprep.subr.mxu0 0.0
  %100 = vmatpush1.msra.mxu0 %v76
  %101 = vmatprep.subr.mxu0 0.0
  %102 = vmatpush1.msra.mxu0 %v77
  %103 = vmatprep.subr.mxu0 0.0
  %104 = vmatpush1.msra.mxu0 %v78
  %105 = vmatprep.subr.mxu0 0.0
  %106 = vmatpush1.msra.mxu0 %v79
  %107 = vmatprep.subr.mxu0 0.0
  %108 = vmatpush1.msra.mxu0 %v80
  %109 = vmatprep.subr.mxu0 0.0
  %110 = vmatpush1.msra.mxu0 %v81
  %111 = vmatprep.subr.mxu0 0.0
  %112 = vmatpush1.msra.mxu0 %v82
  %113 = vmatprep.subr.mxu0 0.0
  %114 = vmatpush1.msra.mxu0 %v83
  %115 = vmatprep.subr.mxu0 0.0
  %116 = vmatpush1.msra.mxu0 %v84
  %117 = vmatprep.subr.mxu0 0.0
  %118 = vmatpush1.msra.mxu0 0.0
  %119 = vmatprep.subr.mxu0 0.0
  %120 = vmatpush1.msra.mxu0 0.0
  %121 = vmatprep.subr.mxu0 0.0
  %122 = vmatpush1.msra.mxu0 0.0
  %123 = vmatprep.subr.mxu0 0.0
  %124 = vmatpush1.msra.mxu0 0.0
  %125 = vmatprep.subr.mxu0 0.0
  %126 = vmatpush1.msra.mxu0 0.0
  %127 = vmatprep.subr.mxu0 0.0
  %128 = vmatpush1.msra.mxu0 0.0
  %129 = vmatprep.subr.mxu0 0.0
  %130 = vmatpush1.msra.mxu0 0.0
  %131 = vmatprep.subr.mxu0 0.0
  %132 = vmatpush1.msra.mxu0 0.0
  %133 = vmatprep.subr.mxu0 0.0
  %134 = vmatpush1.msra.mxu0 0.0
  %135 = vmatprep.subr.mxu0 0.0
  %136 = vmatpush1.msra.mxu0 0.0
  %137 = vmatprep.subr.mxu0 0.0
  %138 = vmatpush1.msra.mxu0 0.0
  %139 = vmatprep.subr.mxu0 0.0
  %140 = vmatpush1.msra.mxu0 0.0
  %141 = vmatprep.subr.mxu0 0.0
  %142 = vmatpush1.msra.mxu0 0.0
  %143 = vmatprep.subr.mxu0 0.0
  %144 = vmatpush1.msra.mxu0 0.0
  %145 = vmatprep.subr.mxu0 0.0
  %146 = vmatpush1.msra.mxu0 0.0
  %147 = vmatprep.subr.mxu0 0.0
  %148 = vmatpush1.msra.mxu0 0.0
  %149 = vmatprep.mubr.f32.mxu0 0.0
  %150 = vmatmul.mubr.f32.gmra.mrb[0].mxu0 %v53
  %v151 = vpop.f32.mrb[0].mxu0
  %v152 = vadd.f32 0.0, %v151
  %v153 = vpop.f32.mrb[0].mxu0
  %154 = vmatprep.mubr.f32.mxu0 0.0
  %155 = vmatmul.mubr.f32.gmra.mrb[0].mxu0 %v54
  %v156 = vpop.f32.mrb[0].mxu0
  %v157 = vadd.f32 0.0, %v156
  %v158 = vpop.f32.mrb[0].mxu0
  %159 = vmatprep.mubr.f32.mxu0 0.0
  %160 = vmatmul.mubr.f32.gmra.mrb[0].mxu0 %v55
  %v161 = vpop.f32.mrb[0].mxu0
  %v162 = vadd.f32 0.0, %v161
  %v163 = vpop.f32.mrb[0].mxu0
  %164 = vmatprep.mubr.f32.mxu0 0.0
  %165 = vmatmul.mubr.f32.gmra.mrb[0].mxu0 %v56
  %v166 = vpop.f32.mrb[0].mxu0
  %v167 = vadd.f32 0.0, %v166
  %v168 = vpop.f32.mrb[0].mxu0
  %169 = vmatprep.mubr.f32.mxu0 0.0
  %170 = vmatmul.mubr.f32.gmra.mrb[0].mxu0 %v57
  %v171 = vpop.f32.mrb[0].mxu0
  %v172 = vadd.f32 0.0, %v171
  %v173 = vpop.f32.mrb[0].mxu0
  %174 = vmatprep.mubr.f32.mxu0 0.0
  %175 = vmatmul.mubr.f32.gmra.mrb[0].mxu0 %v58
  %v176 = vpop.f32.mrb[0].mxu0
  %v177 = vadd.f32 0.0, %v176
  %v178 = vpop.f32.mrb[0].mxu0
  %179 = vmatprep.mubr.f32.mxu0 0.0
  %180 = vmatmul.mubr.f32.gmra.mrb[0].mxu0 %v59
  %v181 = vpop.f32.mrb[0].mxu0
  %v182 = vadd.f32 0.0, %v181
  %v183 = vpop.f32.mrb[0].mxu0
  %184 = vmatprep.mubr.f32.mxu0 0.0
  %185 = vmatmul.mubr.f32.gmra.mrb[0].mxu0 %v60
  %v186 = vpop.f32.mrb[0].mxu0
  %v187 = vadd.f32 0.0, %v186
  %v188 = vpop.f32.mrb[0].mxu0
  %189 = vmatprep.mubr.f32.mxu0 0.0
  %190 = vmatmul.mubr.f32.gmra.mrb[0].mxu0 %v61
  %v191 = vpop.f32.mrb[0].mxu0
  %v192 = vadd.f32 0.0, %v191
  %v193 = vpop.f32.mrb[0].mxu0
  %194 = vmatprep.mubr.f32.mxu0 0.0
  %195 = vmatmul.mubr.f32.gmra.mrb[0].mxu0 %v62
  %v196 = vpop.f32.mrb[0].mxu0
  %v197 = vadd.f32 0.0, %v196
  %v198 = vpop.f32.mrb[0].mxu0
  %199 = vmatprep.mubr.f32.mxu0 0.0
  %200 = vmatmul.mubr.f32.gmra.mrb[0].mxu0 %v63
  %v201 = vpop.f32.mrb[0].mxu0
  %v202 = vadd.f32 0.0, %v201
  %v203 = vpop.f32.mrb[0].mxu0
  %204 = vmatprep.mubr.f32.mxu0 0.0
  %205 = vmatmul.mubr.f32.gmra.mrb[0].mxu0 %v64
  %v206 = vpop.f32.mrb[0].mxu0
  %v207 = vadd.f32 0.0, %v206
  %v208 = vpop.f32.mrb[0].mxu0
  %209 = vmatprep.mubr.f32.mxu0 0.0
  %210 = vmatmul.mubr.f32.gmra.mrb[0].mxu0 %v65
  %v211 = vpop.f32.mrb[0].mxu0
  %v212 = vadd.f32 0.0, %v211
  %v213 = vpop.f32.mrb[0].mxu0
  %214 = vmatprep.mubr.f32.mxu0 0.0
  %215 = vmatmul.mubr.f32.gmra.mrb[0].mxu0 %v66
  %v216 = vpop.f32.mrb[0].mxu0
  %v217 = vadd.f32 0.0, %v216
  %v218 = vpop.f32.mrb[0].mxu0
  %219 = vmatprep.mubr.f32.mxu0 0.0
  %220 = vmatmul.mubr.f32.gmra.mrb[0].mxu0 %v67
  %v221 = vpop.f32.mrb[0].mxu0
  %v222 = vadd.f32 0.0, %v221
  %v223 = vpop.f32.mrb[0].mxu0
  %224 = vmatprep.mubr.f32.mxu0 0.0
  %225 = vmatmul.mubr.f32.gmra.mrb[0].mxu0 %v68
  %v226 = vpop.f32.mrb[0].mxu0
  %v227 = vadd.f32 0.0, %v226
  %v228 = vpop.f32.mrb[0].mxu0
  %229 = vdwg.mxu0
  %v230 = vadd.f32 %v37, %v152
  %v231 = vadd.f32 %v38, %v157
  %v232 = vadd.f32 %v39, %v162
  %v233 = vadd.f32 %v40, %v167
  %v234 = vadd.f32 %v41, %v172
  %v235 = vadd.f32 %v42, %v177
  %v236 = vadd.f32 %v43, %v182
  %v237 = vadd.f32 %v44, %v187
  %v238 = vadd.f32 %v45, %v192
  %v239 = vadd.f32 %v46, %v197
  %v240 = vadd.f32 %v47, %v202
  %v241 = vadd.f32 %v48, %v207
  %v242 = vadd.f32 %v49, %v212
  %v243 = vadd.f32 %v50, %v217
  %v244 = vadd.f32 %v51, %v222
  %v245 = vadd.f32 %v52, %v227
  %246 = vst [vmem:[#allocation2] sm:$0xff] %v230
  %247 = vst [vmem:[#allocation2 + $0x8] sm:$0xff] %v231
  %248 = vst [vmem:[#allocation2 + $0x10] sm:$0xff] %v232
  %249 = vst [vmem:[#allocation2 + $0x18] sm:$0xff] %v233
  %250 = vst [vmem:[#allocation2 + $0x20] sm:$0xff] %v234
  %251 = vst [vmem:[#allocation2 + $0x28] sm:$0xff] %v235
  %252 = vst [vmem:[#allocation2 + $0x30] sm:$0xff] %v236
  %253 = vst [vmem:[#allocation2 + $0x38] sm:$0xff] %v237
  %254 = vst [vmem:[#allocation2 + $0x40] sm:$0xff] %v238
  %255 = vst [vmem:[#allocation2 + $0x48] sm:$0xff] %v239
  %256 = vst [vmem:[#allocation2 + $0x50] sm:$0xff] %v240
  %257 = vst [vmem:[#allocation2 + $0x58] sm:$0xff] %v241
  %258 = vst [vmem:[#allocation2 + $0x60] sm:$0xff] %v242
  %259 = vst [vmem:[#allocation2 + $0x68] sm:$0xff] %v243
  %260 = vst [vmem:[#allocation2 + $0x70] sm:$0xff] %v244
  %261 = vst [vmem:[#allocation2 + $0x78] sm:$0xff] %v245
  // Predicated region
  $region22: #{gcn_forward.3} parent=0 // pred_check
    %p262 = pneg %p17
  $region23: #{gcn_forward.3} parent=0 // pred_check_branch
    %264 = sbr.rel (%p262) target = $region25
  $region24: #{gcn_forward.3} parent=0 // pred_region
    %v265 = vld [vmem:[#allocation2] sm:$0xff]
    %v266 = vld [vmem:[#allocation2 + $0x8] sm:$0xff]
    %v267 = vld [vmem:[#allocation2 + $0x10] sm:$0xff]
    %v268 = vld [vmem:[#allocation2 + $0x18] sm:$0xff]
    %v269 = vld [vmem:[#allocation2 + $0x20] sm:$0xff]
    %v270 = vld [vmem:[#allocation2 + $0x28] sm:$0xff]
    %v271 = vld [vmem:[#allocation2 + $0x30] sm:$0xff]
    %v272 = vld [vmem:[#allocation2 + $0x38] sm:$0xff]
    %v273 = vld [vmem:[#allocation2 + $0x40] sm:$0xff]
    %v274 = vld [vmem:[#allocation2 + $0x48] sm:$0xff]
    %v275 = vld [vmem:[#allocation2 + $0x50] sm:$0xff]
    %v276 = vld [vmem:[#allocation2 + $0x58] sm:$0xff]
    %v277 = vld [vmem:[#allocation2 + $0x60] sm:$0xff]
    %v278 = vld [vmem:[#allocation2 + $0x68] sm:$0xff]
    %v279 = vld [vmem:[#allocation2 + $0x70] sm:$0xff]
    %v280 = vld [vmem:[#allocation2 + $0x78] sm:$0xff]
    %v281 = vld [vmem:[%s2] sm:$0xff]
    %v282 = vld [vmem:[%s2 + $0x8] sm:$0xff]
    %v283 = vld [vmem:[%s2 + $0x10] sm:$0xff]
    %v284 = vld [vmem:[%s2 + $0x18] sm:$0xff]
    %v285 = vld [vmem:[%s2 + $0x20] sm:$0xff]
    %v286 = vld [vmem:[%s2 + $0x28] sm:$0xff]
    %v287 = vld [vmem:[%s2 + $0x30] sm:$0xff]
    %v288 = vld [vmem:[%s2 + $0x38] sm:$0xff]
    %v289 = vld [vmem:[%s2 + $0x40] sm:$0xff]
    %v290 = vld [vmem:[%s2 + $0x48] sm:$0xff]
    %v291 = vld [vmem:[%s2 + $0x50] sm:$0xff]
    %v292 = vld [vmem:[%s2 + $0x58] sm:$0xff]
    %v293 = vld [vmem:[%s2 + $0x60] sm:$0xff]
    %v294 = vld [vmem:[%s2 + $0x68] sm:$0xff]
    %v295 = vld [vmem:[%s2 + $0x70] sm:$0xff]
    %v296 = vld [vmem:[%s2 + $0x78] sm:$0xff]
    %v297 = vld [vmem:[%s3] sm:$0x1]
    %v299 = vlaneseq
    %v300 = vshrl.u32 %v299, 7
    %v301 = vsub.s32 0, %v300
    %v302 = vrot.slane %v297, %v301
    %304 = vmatprep.subr.mxu0 0.0
    %305 = vmatpush1.msra.mxu0 %v281
    %306 = vmatprep.subr.mxu0 0.0
    %307 = vmatpush1.msra.mxu0 %v282
    %308 = vmatprep.subr.mxu0 0.0
    %309 = vmatpush1.msra.mxu0 %v283
    %310 = vmatprep.subr.mxu0 0.0
    %311 = vmatpush1.msra.mxu0 %v284
    %312 = vmatprep.subr.mxu0 0.0
    %313 = vmatpush1.msra.mxu0 %v285
    %314 = vmatprep.subr.mxu0 0.0
    %315 = vmatpush1.msra.mxu0 %v286
    %316 = vmatprep.subr.mxu0 0.0
    %317 = vmatpush1.msra.mxu0 %v287
    %318 = vmatprep.subr.mxu0 0.0
    %319 = vmatpush1.msra.mxu0 %v288
    %320 = vmatprep.subr.mxu0 0.0
    %321 = vmatpush1.msra.mxu0 %v289
    %322 = vmatprep.subr.mxu0 0.0
    %323 = vmatpush1.msra.mxu0 %v290
    %324 = vmatprep.subr.mxu0 0.0
    %325 = vmatpush1.msra.mxu0 %v291
    %326 = vmatprep.subr.mxu0 0.0
    %327 = vmatpush1.msra.mxu0 %v292
    %328 = vmatprep.subr.mxu0 0.0
    %329 = vmatpush1.msra.mxu0 %v293
    %330 = vmatprep.subr.mxu0 0.0
    %331 = vmatpush1.msra.mxu0 %v294
    %332 = vmatprep.subr.mxu0 0.0
    %333 = vmatpush1.msra.mxu0 %v295
    %334 = vmatprep.subr.mxu0 0.0
    %335 = vmatpush1.msra.mxu0 %v296
    %336 = vmatprep.subr.mxu0 0.0
    %337 = vmatpush1.msra.mxu0 0.0
    %338 = vmatprep.subr.mxu0 0.0
    %339 = vmatpush1.msra.mxu0 0.0
    %340 = vmatprep.subr.mxu0 0.0
    %341 = vmatpush1.msra.mxu0 0.0
    %342 = vmatprep.subr.mxu0 0.0
    %343 = vmatpush1.msra.mxu0 0.0
    %344 = vmatprep.subr.mxu0 0.0
    %345 = vmatpush1.msra.mxu0 0.0
    %346 = vmatprep.subr.mxu0 0.0
    %347 = vmatpush1.msra.mxu0 0.0
    %348 = vmatprep.subr.mxu0 0.0
    %349 = vmatpush1.msra.mxu0 0.0
    %350 = vmatprep.subr.mxu0 0.0
    %351 = vmatpush1.msra.mxu0 0.0
    %352 = vmatprep.subr.mxu0 0.0
    %353 = vmatpush1.msra.mxu0 0.0
    %354 = vmatprep.subr.mxu0 0.0
    %355 = vmatpush1.msra.mxu0 0.0
    %356 = vmatprep.subr.mxu0 0.0
    %357 = vmatpush1.msra.mxu0 0.0
    %358 = vmatprep.subr.mxu0 0.0
    %359 = vmatpush1.msra.mxu0 0.0
    %360 = vmatprep.subr.mxu0 0.0
    %361 = vmatpush1.msra.mxu0 0.0
    %362 = vmatprep.subr.mxu0 0.0
    %363 = vmatpush1.msra.mxu0 0.0
    %364 = vmatprep.subr.mxu0 0.0
    %365 = vmatpush1.msra.mxu0 0.0
    %366 = vmatprep.subr.mxu0 0.0
    %367 = vmatpush1.msra.mxu0 0.0
    %368 = vmatprep.mubr.f32.mxu0 0.0
    %369 = vmatmul.mubr.f32.gmra.mrb[0].mxu0 %v265
    %v370 = vpop.f32.mrb[0].mxu0
    %v371 = vadd.f32 %v302, %v370
    %v372 = vpop.f32.mrb[0].mxu0
    %373 = vmatprep.mubr.f32.mxu0 0.0
    %374 = vmatmul.mubr.f32.gmra.mrb[0].mxu0 %v266
    %v375 = vpop.f32.mrb[0].mxu0
    %v376 = vadd.f32 %v302, %v375
    %v377 = vpop.f32.mrb[0].mxu0
    %378 = vmatprep.mubr.f32.mxu0 0.0
    %379 = vmatmul.mubr.f32.gmra.mrb[0].mxu0 %v267
    %v380 = vpop.f32.mrb[0].mxu0
    %v381 = vadd.f32 %v302, %v380
    %v382 = vpop.f32.mrb[0].mxu0
    %383 = vmatprep.mubr.f32.mxu0 0.0
    %384 = vmatmul.mubr.f32.gmra.mrb[0].mxu0 %v268
    %v385 = vpop.f32.mrb[0].mxu0
    %v386 = vadd.f32 %v302, %v385
    %v387 = vpop.f32.mrb[0].mxu0
    %388 = vmatprep.mubr.f32.mxu0 0.0
    %389 = vmatmul.mubr.f32.gmra.mrb[0].mxu0 %v269
    %v390 = vpop.f32.mrb[0].mxu0
    %v391 = vadd.f32 %v302, %v390
    %v392 = vpop.f32.mrb[0].mxu0
    %393 = vmatprep.mubr.f32.mxu0 0.0
    %394 = vmatmul.mubr.f32.gmra.mrb[0].mxu0 %v270
    %v395 = vpop.f32.mrb[0].mxu0
    %v396 = vadd.f32 %v302, %v395
    %v397 = vpop.f32.mrb[0].mxu0
    %398 = vmatprep.mubr.f32.mxu0 0.0
    %399 = vmatmul.mubr.f32.gmra.mrb[0].mxu0 %v271
    %v400 = vpop.f32.mrb[0].mxu0
    %v401 = vadd.f32 %v302, %v400
    %v402 = vpop.f32.mrb[0].mxu0
    %403 = vmatprep.mubr.f32.mxu0 0.0
    %404 = vmatmul.mubr.f32.gmra.mrb[0].mxu0 %v272
    %v405 = vpop.f32.mrb[0].mxu0
    %v406 = vadd.f32 %v302, %v405
    %v407 = vpop.f32.mrb[0].mxu0
    %408 = vmatprep.mubr.f32.mxu0 0.0
    %409 = vmatmul.mubr.f32.gmra.mrb[0].mxu0 %v273
    %v410 = vpop.f32.mrb[0].mxu0
    %v411 = vadd.f32 %v302, %v410
    %v412 = vpop.f32.mrb[0].mxu0
    %413 = vmatprep.mubr.f32.mxu0 0.0
    %414 = vmatmul.mubr.f32.gmra.mrb[0].mxu0 %v274
    %v415 = vpop.f32.mrb[0].mxu0
    %v416 = vadd.f32 %v302, %v415
    %v417 = vpop.f32.mrb[0].mxu0
    %418 = vmatprep.mubr.f32.mxu0 0.0
    %419 = vmatmul.mubr.f32.gmra.mrb[0].mxu0 %v275
    %v420 = vpop.f32.mrb[0].mxu0
    %v421 = vadd.f32 %v302, %v420
    %v422 = vpop.f32.mrb[0].mxu0
    %423 = vmatprep.mubr.f32.mxu0 0.0
    %424 = vmatmul.mubr.f32.gmra.mrb[0].mxu0 %v276
    %v425 = vpop.f32.mrb[0].mxu0
    %v426 = vadd.f32 %v302, %v425
    %v427 = vpop.f32.mrb[0].mxu0
    %428 = vmatprep.mubr.f32.mxu0 0.0
    %429 = vmatmul.mubr.f32.gmra.mrb[0].mxu0 %v277
    %v430 = vpop.f32.mrb[0].mxu0
    %v431 = vadd.f32 %v302, %v430
    %v432 = vpop.f32.mrb[0].mxu0
    %433 = vmatprep.mubr.f32.mxu0 0.0
    %434 = vmatmul.mubr.f32.gmra.mrb[0].mxu0 %v278
    %v435 = vpop.f32.mrb[0].mxu0
    %v436 = vadd.f32 %v302, %v435
    %v437 = vpop.f32.mrb[0].mxu0
    %438 = vmatprep.mubr.f32.mxu0 0.0
    %439 = vmatmul.mubr.f32.gmra.mrb[0].mxu0 %v279
    %v440 = vpop.f32.mrb[0].mxu0
    %v441 = vadd.f32 %v302, %v440
    %v442 = vpop.f32.mrb[0].mxu0
    %443 = vmatprep.mubr.f32.mxu0 0.0
    %444 = vmatmul.mubr.f32.gmra.mrb[0].mxu0 %v280
    %v445 = vpop.f32.mrb[0].mxu0
    %v446 = vadd.f32 %v302, %v445
    %v447 = vpop.f32.mrb[0].mxu0
    %448 = vdwg.mxu0
    %449 = vst [vmem:[%s4] sm:$0xff] %v371
    %450 = vst [vmem:[%s4 + $0x8] sm:$0xff] %v376
    %451 = vst [vmem:[%s4 + $0x10] sm:$0xff] %v381
    %452 = vst [vmem:[%s4 + $0x18] sm:$0xff] %v386
    %453 = vst [vmem:[%s4 + $0x20] sm:$0xff] %v391
    %454 = vst [vmem:[%s4 + $0x28] sm:$0xff] %v396
    %455 = vst [vmem:[%s4 + $0x30] sm:$0xff] %v401
    %456 = vst [vmem:[%s4 + $0x38] sm:$0xff] %v406
    %457 = vst [vmem:[%s4 + $0x40] sm:$0xff] %v411
    %458 = vst [vmem:[%s4 + $0x48] sm:$0xff] %v416
    %459 = vst [vmem:[%s4 + $0x50] sm:$0xff] %v421
    %460 = vst [vmem:[%s4 + $0x58] sm:$0xff] %v426
    %461 = vst [vmem:[%s4 + $0x60] sm:$0xff] %v431
    %462 = vst [vmem:[%s4 + $0x68] sm:$0xff] %v436
    %463 = vst [vmem:[%s4 + $0x70] sm:$0xff] %v441
    %464 = vst [vmem:[%s4 + $0x78] sm:$0xff] %v446
  $region25: #{gcn_forward.3} parent=0 // pred_fallthru
    _
  // Predicated region
  $region26: #{gcn_forward.3} parent=0 // pred_check
    _
  $region27: #{gcn_forward.3} parent=0 // pred_check_branch
    %466 = sbr.rel (0) target = $region29
  $region28: #{gcn_forward.3} parent=0 // pred_region
    _
  $region29: #{gcn_forward.3} parent=0 // pred_fallthru
    _
  // Predicated region
  $region30: #{gcn_forward.3} parent=0 // pred_check
    _
  $region31: #{gcn_forward.3} parent=0 // pred_check_branch
    %468 = sbr.rel (0) target = $region33
  $region32: #{gcn_forward.3} parent=0 // pred_region
    _
  $region33: #{gcn_forward.3} parent=0 // pred_fallthru
    _

// kernel: gcn_forward.2
$region0: #{gcn_forward.2}
  #allocation0 [shape = 'u32[]', space=smem, size = 0x4, offset = 0x4, fixed_abs, tag = 'smem constant byte address 0x4 - core index']
  #allocation1 [shape = 'u32[144,128]{1,0:T(1,128)}', space=vmem, size = 0x12000, scoped, tag = 'internal scratch']
  #allocation2 [shape = 'f32[128,128]{1,0:T(8,128)}', space=vmem, size = 0x10000, scoped, tag = 'scratch operand']
  %s0 = inlined_call_operand.vmem [shape: f32[128,128], index: 0, kind: input, shape index: {}]
  %s1 = inlined_call_operand.vmem [shape: f32[128,128], index: 1, kind: input, shape index: {}]
  %s2 = inlined_call_operand.vmem [shape: f32[128,128], index: 2, kind: input, shape index: {}]
  %s3 = inlined_call_operand.vmem [shape: f32[1,128], index: 3, kind: input, shape index: {}]
  %s4 = inlined_call_operand.vmem [shape: f32[128,128], index: 4, kind: output, shape index: {}]
  %s5 = sld [smem:[#allocation0]]
  $region34: #{gcn_forward.2} parent=0
    _
  %s7 = ssub.s32 1, %s5
  %s8 = scalar_select 0, %s7, %s5
  // Predicated region
  $region2: #{gcn_forward.2} parent=0 // pred_check
    _
  $region3: #{gcn_forward.2} parent=0 // pred_check_branch
    %10 = sbr.rel (0) target = $region5
  $region4: #{gcn_forward.2} parent=0 // pred_region
    _
  $region5: #{gcn_forward.2} parent=0 // pred_fallthru
    _
  // Predicated region
  $region6: #{gcn_forward.2} parent=0 // pred_check
    _
  $region7: #{gcn_forward.2} parent=0 // pred_check_branch
    %12 = sbr.rel (0) target = $region9
  $region8: #{gcn_forward.2} parent=0 // pred_region
    _
  $region9: #{gcn_forward.2} parent=0 // pred_fallthru
    _
  // Predicated region
  $region10: #{gcn_forward.2} parent=0 // pred_check
    _
  $region11: #{gcn_forward.2} parent=0 // pred_check_branch
    %14 = sbr.rel (0) target = $region13
  $region12: #{gcn_forward.2} parent=0 // pred_region
    _
  $region13: #{gcn_forward.2} parent=0 // pred_fallthru
    _
  // Predicated region
  $region14: #{gcn_forward.2} parent=0 // pred_check
    _
  $region15: #{gcn_forward.2} parent=0 // pred_check_branch
    %16 = sbr.rel (0) target = $region17
  $region16: #{gcn_forward.2} parent=0 // pred_region
    _
  $region17: #{gcn_forward.2} parent=0 // pred_fallthru
    _
  %p17 = scmp.eq.s32.totalorder 0, 0
  // Predicated region
  $region18: #{gcn_forward.2} parent=0 // pred_check
    %p18 = pneg %p17
  $region19: #{gcn_forward.2} parent=0 // pred_check_branch
    %20 = sbr.rel (%p18) target = $region21
  $region20: #{gcn_forward.2} parent=0 // pred_region
    %21 = vst [vmem:[#allocation2] sm:$0xff] 0.0
    %22 = vst [vmem:[#allocation2 + $0x8] sm:$0xff] 0.0
    %23 = vst [vmem:[#allocation2 + $0x10] sm:$0xff] 0.0
    %24 = vst [vmem:[#allocation2 + $0x18] sm:$0xff] 0.0
    %25 = vst [vmem:[#allocation2 + $0x20] sm:$0xff] 0.0
    %26 = vst [vmem:[#allocation2 + $0x28] sm:$0xff] 0.0
    %27 = vst [vmem:[#allocation2 + $0x30] sm:$0xff] 0.0
    %28 = vst [vmem:[#allocation2 + $0x38] sm:$0xff] 0.0
    %29 = vst [vmem:[#allocation2 + $0x40] sm:$0xff] 0.0
    %30 = vst [vmem:[#allocation2 + $0x48] sm:$0xff] 0.0
    %31 = vst [vmem:[#allocation2 + $0x50] sm:$0xff] 0.0
    %32 = vst [vmem:[#allocation2 + $0x58] sm:$0xff] 0.0
    %33 = vst [vmem:[#allocation2 + $0x60] sm:$0xff] 0.0
    %34 = vst [vmem:[#allocation2 + $0x68] sm:$0xff] 0.0
    %35 = vst [vmem:[#allocation2 + $0x70] sm:$0xff] 0.0
    %36 = vst [vmem:[#allocation2 + $0x78] sm:$0xff] 0.0
  $region21: #{gcn_forward.2} parent=0 // pred_fallthru
    _
  %v37 = vld [vmem:[#allocation2] sm:$0xff]
  %v38 = vld [vmem:[#allocation2 + $0x8] sm:$0xff]
  %v39 = vld [vmem:[#allocation2 + $0x10] sm:$0xff]
  %v40 = vld [vmem:[#allocation2 + $0x18] sm:$0xff]
  %v41 = vld [vmem:[#allocation2 + $0x20] sm:$0xff]
  %v42 = vld [vmem:[#allocation2 + $0x28] sm:$0xff]
  %v43 = vld [vmem:[#allocation2 + $0x30] sm:$0xff]
  %v44 = vld [vmem:[#allocation2 + $0x38] sm:$0xff]
  %v45 = vld [vmem:[#allocation2 + $0x40] sm:$0xff]
  %v46 = vld [vmem:[#allocation2 + $0x48] sm:$0xff]
  %v47 = vld [vmem:[#allocation2 + $0x50] sm:$0xff]
  %v48 = vld [vmem:[#allocation2 + $0x58] sm:$0xff]
  %v49 = vld [vmem:[#allocation2 + $0x60] sm:$0xff]
  %v50 = vld [vmem:[#allocation2 + $0x68] sm:$0xff]
  %v51 = vld [vmem:[#allocation2 + $0x70] sm:$0xff]
  %v52 = vld [vmem:[#allocation2 + $0x78] sm:$0xff]
  %v53 = vld [vmem:[%s0] sm:$0xff]
  %v54 = vld [vmem:[%s0 + $0x8] sm:$0xff]
  %v55 = vld [vmem:[%s0 + $0x10] sm:$0xff]
  %v56 = vld [vmem:[%s0 + $0x18] sm:$0xff]
  %v57 = vld [vmem:[%s0 + $0x20] sm:$0xff]
  %v58 = vld [vmem:[%s0 + $0x28] sm:$0xff]
  %v59 = vld [vmem:[%s0 + $0x30] sm:$0xff]
  %v60 = vld [vmem:[%s0 + $0x38] sm:$0xff]
  %v61 = vld [vmem:[%s0 + $0x40] sm:$0xff]
  %v62 = vld [vmem:[%s0 + $0x48] sm:$0xff]
  %v63 = vld [vmem:[%s0 + $0x50] sm:$0xff]
  %v64 = vld [vmem:[%s0 + $0x58] sm:$0xff]
  %v65 = vld [vmem:[%s0 + $0x60] sm:$0xff]
  %v66 = vld [vmem:[%s0 + $0x68] sm:$0xff]
  %v67 = vld [vmem:[%s0 + $0x70] sm:$0xff]
  %v68 = vld [vmem:[%s0 + $0x78] sm:$0xff]
  %v69 = vld [vmem:[%s1] sm:$0xff]
  %v70 = vld [vmem:[%s1 + $0x8] sm:$0xff]
  %v71 = vld [vmem:[%s1 + $0x10] sm:$0xff]
  %v72 = vld [vmem:[%s1 + $0x18] sm:$0xff]
  %v73 = vld [vmem:[%s1 + $0x20] sm:$0xff]
  %v74 = vld [vmem:[%s1 + $0x28] sm:$0xff]
  %v75 = vld [vmem:[%s1 + $0x30] sm:$0xff]
  %v76 = vld [vmem:[%s1 + $0x38] sm:$0xff]
  %v77 = vld [vmem:[%s1 + $0x40] sm:$0xff]
  %v78 = vld [vmem:[%s1 + $0x48] sm:$0xff]
  %v79 = vld [vmem:[%s1 + $0x50] sm:$0xff]
  %v80 = vld [vmem:[%s1 + $0x58] sm:$0xff]
  %v81 = vld [vmem:[%s1 + $0x60] sm:$0xff]
  %v82 = vld [vmem:[%s1 + $0x68] sm:$0xff]
  %v83 = vld [vmem:[%s1 + $0x70] sm:$0xff]
  %v84 = vld [vmem:[%s1 + $0x78] sm:$0xff]
  %85 = vmatprep.subr.mxu0 0.0
  %86 = vmatpush1.msra.mxu0 %v69
  %87 = vmatprep.subr.mxu0 0.0
  %88 = vmatpush1.msra.mxu0 %v70
  %89 = vmatprep.subr.mxu0 0.0
  %90 = vmatpush1.msra.mxu0 %v71
  %91 = vmatprep.subr.mxu0 0.0
  %92 = vmatpush1.msra.mxu0 %v72
  %93 = vmatprep.subr.mxu0 0.0
  %94 = vmatpush1.msra.mxu0 %v73
  %95 = vmatprep.subr.mxu0 0.0
  %96 = vmatpush1.msra.mxu0 %v74
  %97 = vmatprep.subr.mxu0 0.0
  %98 = vmatpush1.msra.mxu0 %v75
  %99 = vmatprep.subr.mxu0 0.0
  %100 = vmatpush1.msra.mxu0 %v76
  %101 = vmatprep.subr.mxu0 0.0
  %102 = vmatpush1.msra.mxu0 %v77
  %103 = vmatprep.subr.mxu0 0.0
  %104 = vmatpush1.msra.mxu0 %v78
  %105 = vmatprep.subr.mxu0 0.0
  %106 = vmatpush1.msra.mxu0 %v79
  %107 = vmatprep.subr.mxu0 0.0
  %108 = vmatpush1.msra.mxu0 %v80
  %109 = vmatprep.subr.mxu0 0.0
  %110 = vmatpush1.msra.mxu0 %v81
  %111 = vmatprep.subr.mxu0 0.0
  %112 = vmatpush1.msra.mxu0 %v82
  %113 = vmatprep.subr.mxu0 0.0
  %114 = vmatpush1.msra.mxu0 %v83
  %115 = vmatprep.subr.mxu0 0.0
  %116 = vmatpush1.msra.mxu0 %v84
  %117 = vmatprep.subr.mxu0 0.0
  %118 = vmatpush1.msra.mxu0 0.0
  %119 = vmatprep.subr.mxu0 0.0
  %120 = vmatpush1.msra.mxu0 0.0
  %121 = vmatprep.subr.mxu0 0.0
  %122 = vmatpush1.msra.mxu0 0.0
  %123 = vmatprep.subr.mxu0 0.0
  %124 = vmatpush1.msra.mxu0 0.0
  %125 = vmatprep.subr.mxu0 0.0
  %126 = vmatpush1.msra.mxu0 0.0
  %127 = vmatprep.subr.mxu0 0.0
  %128 = vmatpush1.msra.mxu0 0.0
  %129 = vmatprep.subr.mxu0 0.0
  %130 = vmatpush1.msra.mxu0 0.0
  %131 = vmatprep.subr.mxu0 0.0
  %132 = vmatpush1.msra.mxu0 0.0
  %133 = vmatprep.subr.mxu0 0.0
  %134 = vmatpush1.msra.mxu0 0.0
  %135 = vmatprep.subr.mxu0 0.0
  %136 = vmatpush1.msra.mxu0 0.0
  %137 = vmatprep.subr.mxu0 0.0
  %138 = vmatpush1.msra.mxu0 0.0
  %139 = vmatprep.subr.mxu0 0.0
  %140 = vmatpush1.msra.mxu0 0.0
  %141 = vmatprep.subr.mxu0 0.0
  %142 = vmatpush1.msra.mxu0 0.0
  %143 = vmatprep.subr.mxu0 0.0
  %144 = vmatpush1.msra.mxu0 0.0
  %145 = vmatprep.subr.mxu0 0.0
  %146 = vmatpush1.msra.mxu0 0.0
  %147 = vmatprep.subr.mxu0 0.0
  %148 = vmatpush1.msra.mxu0 0.0
  %149 = vmatprep.mubr.f32.mxu0 0.0
  %150 = vmatmul.mubr.f32.gmra.mrb[0].mxu0 %v53
  %v151 = vpop.f32.mrb[0].mxu0
  %v152 = vadd.f32 0.0, %v151
  %v153 = vpop.f32.mrb[0].mxu0
  %154 = vmatprep.mubr.f32.mxu0 0.0
  %155 = vmatmul.mubr.f32.gmra.mrb[0].mxu0 %v54
  %v156 = vpop.f32.mrb[0].mxu0
  %v157 = vadd.f32 0.0, %v156
  %v158 = vpop.f32.mrb[0].mxu0
  %159 = vmatprep.mubr.f32.mxu0 0.0
  %160 = vmatmul.mubr.f32.gmra.mrb[0].mxu0 %v55
  %v161 = vpop.f32.mrb[0].mxu0
  %v162 = vadd.f32 0.0, %v161
  %v163 = vpop.f32.mrb[0].mxu0
  %164 = vmatprep.mubr.f32.mxu0 0.0
  %165 = vmatmul.mubr.f32.gmra.mrb[0].mxu0 %v56
  %v166 = vpop.f32.mrb[0].mxu0
  %v167 = vadd.f32 0.0, %v166
  %v168 = vpop.f32.mrb[0].mxu0
  %169 = vmatprep.mubr.f32.mxu0 0.0
  %170 = vmatmul.mubr.f32.gmra.mrb[0].mxu0 %v57
  %v171 = vpop.f32.mrb[0].mxu0
  %v172 = vadd.f32 0.0, %v171
  %v173 = vpop.f32.mrb[0].mxu0
  %174 = vmatprep.mubr.f32.mxu0 0.0
  %175 = vmatmul.mubr.f32.gmra.mrb[0].mxu0 %v58
  %v176 = vpop.f32.mrb[0].mxu0
  %v177 = vadd.f32 0.0, %v176
  %v178 = vpop.f32.mrb[0].mxu0
  %179 = vmatprep.mubr.f32.mxu0 0.0
  %180 = vmatmul.mubr.f32.gmra.mrb[0].mxu0 %v59
  %v181 = vpop.f32.mrb[0].mxu0
  %v182 = vadd.f32 0.0, %v181
  %v183 = vpop.f32.mrb[0].mxu0
  %184 = vmatprep.mubr.f32.mxu0 0.0
  %185 = vmatmul.mubr.f32.gmra.mrb[0].mxu0 %v60
  %v186 = vpop.f32.mrb[0].mxu0
  %v187 = vadd.f32 0.0, %v186
  %v188 = vpop.f32.mrb[0].mxu0
  %189 = vmatprep.mubr.f32.mxu0 0.0
  %190 = vmatmul.mubr.f32.gmra.mrb[0].mxu0 %v61
  %v191 = vpop.f32.mrb[0].mxu0
  %v192 = vadd.f32 0.0, %v191
  %v193 = vpop.f32.mrb[0].mxu0
  %194 = vmatprep.mubr.f32.mxu0 0.0
  %195 = vmatmul.mubr.f32.gmra.mrb[0].mxu0 %v62
  %v196 = vpop.f32.mrb[0].mxu0
  %v197 = vadd.f32 0.0, %v196
  %v198 = vpop.f32.mrb[0].mxu0
  %199 = vmatprep.mubr.f32.mxu0 0.0
  %200 = vmatmul.mubr.f32.gmra.mrb[0].mxu0 %v63
  %v201 = vpop.f32.mrb[0].mxu0
  %v202 = vadd.f32 0.0, %v201
  %v203 = vpop.f32.mrb[0].mxu0
  %204 = vmatprep.mubr.f32.mxu0 0.0
  %205 = vmatmul.mubr.f32.gmra.mrb[0].mxu0 %v64
  %v206 = vpop.f32.mrb[0].mxu0
  %v207 = vadd.f32 0.0, %v206
  %v208 = vpop.f32.mrb[0].mxu0
  %209 = vmatprep.mubr.f32.mxu0 0.0
  %210 = vmatmul.mubr.f32.gmra.mrb[0].mxu0 %v65
  %v211 = vpop.f32.mrb[0].mxu0
  %v212 = vadd.f32 0.0, %v211
  %v213 = vpop.f32.mrb[0].mxu0
  %214 = vmatprep.mubr.f32.mxu0 0.0
  %215 = vmatmul.mubr.f32.gmra.mrb[0].mxu0 %v66
  %v216 = vpop.f32.mrb[0].mxu0
  %v217 = vadd.f32 0.0, %v216
  %v218 = vpop.f32.mrb[0].mxu0
  %219 = vmatprep.mubr.f32.mxu0 0.0
  %220 = vmatmul.mubr.f32.gmra.mrb[0].mxu0 %v67
  %v221 = vpop.f32.mrb[0].mxu0
  %v222 = vadd.f32 0.0, %v221
  %v223 = vpop.f32.mrb[0].mxu0
  %224 = vmatprep.mubr.f32.mxu0 0.0
  %225 = vmatmul.mubr.f32.gmra.mrb[0].mxu0 %v68
  %v226 = vpop.f32.mrb[0].mxu0
  %v227 = vadd.f32 0.0, %v226
  %v228 = vpop.f32.mrb[0].mxu0
  %229 = vdwg.mxu0
  %v230 = vadd.f32 %v37, %v152
  %v231 = vadd.f32 %v38, %v157
  %v232 = vadd.f32 %v39, %v162
  %v233 = vadd.f32 %v40, %v167
  %v234 = vadd.f32 %v41, %v172
  %v235 = vadd.f32 %v42, %v177
  %v236 = vadd.f32 %v43, %v182
  %v237 = vadd.f32 %v44, %v187
  %v238 = vadd.f32 %v45, %v192
  %v239 = vadd.f32 %v46, %v197
  %v240 = vadd.f32 %v47, %v202
  %v241 = vadd.f32 %v48, %v207
  %v242 = vadd.f32 %v49, %v212
  %v243 = vadd.f32 %v50, %v217
  %v244 = vadd.f32 %v51, %v222
  %v245 = vadd.f32 %v52, %v227
  %246 = vst [vmem:[#allocation2] sm:$0xff] %v230
  %247 = vst [vmem:[#allocation2 + $0x8] sm:$0xff] %v231
  %248 = vst [vmem:[#allocation2 + $0x10] sm:$0xff] %v232
  %249 = vst [vmem:[#allocation2 + $0x18] sm:$0xff] %v233
  %250 = vst [vmem:[#allocation2 + $0x20] sm:$0xff] %v234
  %251 = vst [vmem:[#allocation2 + $0x28] sm:$0xff] %v235
  %252 = vst [vmem:[#allocation2 + $0x30] sm:$0xff] %v236
  %253 = vst [vmem:[#allocation2 + $0x38] sm:$0xff] %v237
  %254 = vst [vmem:[#allocation2 + $0x40] sm:$0xff] %v238
  %255 = vst [vmem:[#allocation2 + $0x48] sm:$0xff] %v239
  %256 = vst [vmem:[#allocation2 + $0x50] sm:$0xff] %v240
  %257 = vst [vmem:[#allocation2 + $0x58] sm:$0xff] %v241
  %258 = vst [vmem:[#allocation2 + $0x60] sm:$0xff] %v242
  %259 = vst [vmem:[#allocation2 + $0x68] sm:$0xff] %v243
  %260 = vst [vmem:[#allocation2 + $0x70] sm:$0xff] %v244
  %261 = vst [vmem:[#allocation2 + $0x78] sm:$0xff] %v245
  // Predicated region
  $region22: #{gcn_forward.2} parent=0 // pred_check
    %p262 = pneg %p17
  $region23: #{gcn_forward.2} parent=0 // pred_check_branch
    %264 = sbr.rel (%p262) target = $region25
  $region24: #{gcn_forward.2} parent=0 // pred_region
    %v265 = vld [vmem:[#allocation2] sm:$0xff]
    %v266 = vld [vmem:[#allocation2 + $0x8] sm:$0xff]
    %v267 = vld [vmem:[#allocation2 + $0x10] sm:$0xff]
    %v268 = vld [vmem:[#allocation2 + $0x18] sm:$0xff]
    %v269 = vld [vmem:[#allocation2 + $0x20] sm:$0xff]
    %v270 = vld [vmem:[#allocation2 + $0x28] sm:$0xff]
    %v271 = vld [vmem:[#allocation2 + $0x30] sm:$0xff]
    %v272 = vld [vmem:[#allocation2 + $0x38] sm:$0xff]
    %v273 = vld [vmem:[#allocation2 + $0x40] sm:$0xff]
    %v274 = vld [vmem:[#allocation2 + $0x48] sm:$0xff]
    %v275 = vld [vmem:[#allocation2 + $0x50] sm:$0xff]
    %v276 = vld [vmem:[#allocation2 + $0x58] sm:$0xff]
    %v277 = vld [vmem:[#allocation2 + $0x60] sm:$0xff]
    %v278 = vld [vmem:[#allocation2 + $0x68] sm:$0xff]
    %v279 = vld [vmem:[#allocation2 + $0x70] sm:$0xff]
    %v280 = vld [vmem:[#allocation2 + $0x78] sm:$0xff]
    %v281 = vld [vmem:[%s2] sm:$0xff]
    %v282 = vld [vmem:[%s2 + $0x8] sm:$0xff]
    %v283 = vld [vmem:[%s2 + $0x10] sm:$0xff]
    %v284 = vld [vmem:[%s2 + $0x18] sm:$0xff]
    %v285 = vld [vmem:[%s2 + $0x20] sm:$0xff]
    %v286 = vld [vmem:[%s2 + $0x28] sm:$0xff]
    %v287 = vld [vmem:[%s2 + $0x30] sm:$0xff]
    %v288 = vld [vmem:[%s2 + $0x38] sm:$0xff]
    %v289 = vld [vmem:[%s2 + $0x40] sm:$0xff]
    %v290 = vld [vmem:[%s2 + $0x48] sm:$0xff]
    %v291 = vld [vmem:[%s2 + $0x50] sm:$0xff]
    %v292 = vld [vmem:[%s2 + $0x58] sm:$0xff]
    %v293 = vld [vmem:[%s2 + $0x60] sm:$0xff]
    %v294 = vld [vmem:[%s2 + $0x68] sm:$0xff]
    %v295 = vld [vmem:[%s2 + $0x70] sm:$0xff]
    %v296 = vld [vmem:[%s2 + $0x78] sm:$0xff]
    %v297 = vld [vmem:[%s3] sm:$0x1]
    %v299 = vlaneseq
    %v300 = vshrl.u32 %v299, 7
    %v301 = vsub.s32 0, %v300
    %v302 = vrot.slane %v297, %v301
    %304 = vmatprep.subr.mxu0 0.0
    %305 = vmatpush1.msra.mxu0 %v281
    %306 = vmatprep.subr.mxu0 0.0
    %307 = vmatpush1.msra.mxu0 %v282
    %308 = vmatprep.subr.mxu0 0.0
    %309 = vmatpush1.msra.mxu0 %v283
    %310 = vmatprep.subr.mxu0 0.0
    %311 = vmatpush1.msra.mxu0 %v284
    %312 = vmatprep.subr.mxu0 0.0
    %313 = vmatpush1.msra.mxu0 %v285
    %314 = vmatprep.subr.mxu0 0.0
    %315 = vmatpush1.msra.mxu0 %v286
    %316 = vmatprep.subr.mxu0 0.0
    %317 = vmatpush1.msra.mxu0 %v287
    %318 = vmatprep.subr.mxu0 0.0
    %319 = vmatpush1.msra.mxu0 %v288
    %320 = vmatprep.subr.mxu0 0.0
    %321 = vmatpush1.msra.mxu0 %v289
    %322 = vmatprep.subr.mxu0 0.0
    %323 = vmatpush1.msra.mxu0 %v290
    %324 = vmatprep.subr.mxu0 0.0
    %325 = vmatpush1.msra.mxu0 %v291
    %326 = vmatprep.subr.mxu0 0.0
    %327 = vmatpush1.msra.mxu0 %v292
    %328 = vmatprep.subr.mxu0 0.0
    %329 = vmatpush1.msra.mxu0 %v293
    %330 = vmatprep.subr.mxu0 0.0
    %331 = vmatpush1.msra.mxu0 %v294
    %332 = vmatprep.subr.mxu0 0.0
    %333 = vmatpush1.msra.mxu0 %v295
    %334 = vmatprep.subr.mxu0 0.0
    %335 = vmatpush1.msra.mxu0 %v296
    %336 = vmatprep.subr.mxu0 0.0
    %337 = vmatpush1.msra.mxu0 0.0
    %338 = vmatprep.subr.mxu0 0.0
    %339 = vmatpush1.msra.mxu0 0.0
    %340 = vmatprep.subr.mxu0 0.0
    %341 = vmatpush1.msra.mxu0 0.0
    %342 = vmatprep.subr.mxu0 0.0
    %343 = vmatpush1.msra.mxu0 0.0
    %344 = vmatprep.subr.mxu0 0.0
    %345 = vmatpush1.msra.mxu0 0.0
    %346 = vmatprep.subr.mxu0 0.0
    %347 = vmatpush1.msra.mxu0 0.0
    %348 = vmatprep.subr.mxu0 0.0
    %349 = vmatpush1.msra.mxu0 0.0
    %350 = vmatprep.subr.mxu0 0.0
    %351 = vmatpush1.msra.mxu0 0.0
    %352 = vmatprep.subr.mxu0 0.0
    %353 = vmatpush1.msra.mxu0 0.0
    %354 = vmatprep.subr.mxu0 0.0
    %355 = vmatpush1.msra.mxu0 0.0
    %356 = vmatprep.subr.mxu0 0.0
    %357 = vmatpush1.msra.mxu0 0.0
    %358 = vmatprep.subr.mxu0 0.0
    %359 = vmatpush1.msra.mxu0 0.0
    %360 = vmatprep.subr.mxu0 0.0
    %361 = vmatpush1.msra.mxu0 0.0
    %362 = vmatprep.subr.mxu0 0.0
    %363 = vmatpush1.msra.mxu0 0.0
    %364 = vmatprep.subr.mxu0 0.0
    %365 = vmatpush1.msra.mxu0 0.0
    %366 = vmatprep.subr.mxu0 0.0
    %367 = vmatpush1.msra.mxu0 0.0
    %368 = vmatprep.mubr.f32.mxu0 0.0
    %369 = vmatmul.mubr.f32.gmra.mrb[0].mxu0 %v265
    %v370 = vpop.f32.mrb[0].mxu0
    %v371 = vadd.f32 %v302, %v370
    %v372 = vpop.f32.mrb[0].mxu0
    %373 = vmatprep.mubr.f32.mxu0 0.0
    %374 = vmatmul.mubr.f32.gmra.mrb[0].mxu0 %v266
    %v375 = vpop.f32.mrb[0].mxu0
    %v376 = vadd.f32 %v302, %v375
    %v377 = vpop.f32.mrb[0].mxu0
    %378 = vmatprep.mubr.f32.mxu0 0.0
    %379 = vmatmul.mubr.f32.gmra.mrb[0].mxu0 %v267
    %v380 = vpop.f32.mrb[0].mxu0
    %v381 = vadd.f32 %v302, %v380
    %v382 = vpop.f32.mrb[0].mxu0
    %383 = vmatprep.mubr.f32.mxu0 0.0
    %384 = vmatmul.mubr.f32.gmra.mrb[0].mxu0 %v268
    %v385 = vpop.f32.mrb[0].mxu0
    %v386 = vadd.f32 %v302, %v385
    %v387 = vpop.f32.mrb[0].mxu0
    %388 = vmatprep.mubr.f32.mxu0 0.0
    %389 = vmatmul.mubr.f32.gmra.mrb[0].mxu0 %v269
    %v390 = vpop.f32.mrb[0].mxu0
    %v391 = vadd.f32 %v302, %v390
    %v392 = vpop.f32.mrb[0].mxu0
    %393 = vmatprep.mubr.f32.mxu0 0.0
    %394 = vmatmul.mubr.f32.gmra.mrb[0].mxu0 %v270
    %v395 = vpop.f32.mrb[0].mxu0
    %v396 = vadd.f32 %v302, %v395
    %v397 = vpop.f32.mrb[0].mxu0
    %398 = vmatprep.mubr.f32.mxu0 0.0
    %399 = vmatmul.mubr.f32.gmra.mrb[0].mxu0 %v271
    %v400 = vpop.f32.mrb[0].mxu0
    %v401 = vadd.f32 %v302, %v400
    %v402 = vpop.f32.mrb[0].mxu0
    %403 = vmatprep.mubr.f32.mxu0 0.0
    %404 = vmatmul.mubr.f32.gmra.mrb[0].mxu0 %v272
    %v405 = vpop.f32.mrb[0].mxu0
    %v406 = vadd.f32 %v302, %v405
    %v407 = vpop.f32.mrb[0].mxu0
    %408 = vmatprep.mubr.f32.mxu0 0.0
    %409 = vmatmul.mubr.f32.gmra.mrb[0].mxu0 %v273
    %v410 = vpop.f32.mrb[0].mxu0
    %v411 = vadd.f32 %v302, %v410
    %v412 = vpop.f32.mrb[0].mxu0
    %413 = vmatprep.mubr.f32.mxu0 0.0
    %414 = vmatmul.mubr.f32.gmra.mrb[0].mxu0 %v274
    %v415 = vpop.f32.mrb[0].mxu0
    %v416 = vadd.f32 %v302, %v415
    %v417 = vpop.f32.mrb[0].mxu0
    %418 = vmatprep.mubr.f32.mxu0 0.0
    %419 = vmatmul.mubr.f32.gmra.mrb[0].mxu0 %v275
    %v420 = vpop.f32.mrb[0].mxu0
    %v421 = vadd.f32 %v302, %v420
    %v422 = vpop.f32.mrb[0].mxu0
    %423 = vmatprep.mubr.f32.mxu0 0.0
    %424 = vmatmul.mubr.f32.gmra.mrb[0].mxu0 %v276
    %v425 = vpop.f32.mrb[0].mxu0
    %v426 = vadd.f32 %v302, %v425
    %v427 = vpop.f32.mrb[0].mxu0
    %428 = vmatprep.mubr.f32.mxu0 0.0
    %429 = vmatmul.mubr.f32.gmra.mrb[0].mxu0 %v277
    %v430 = vpop.f32.mrb[0].mxu0
    %v431 = vadd.f32 %v302, %v430
    %v432 = vpop.f32.mrb[0].mxu0
    %433 = vmatprep.mubr.f32.mxu0 0.0
    %434 = vmatmul.mubr.f32.gmra.mrb[0].mxu0 %v278
    %v435 = vpop.f32.mrb[0].mxu0
    %v436 = vadd.f32 %v302, %v435
    %v437 = vpop.f32.mrb[0].mxu0
    %438 = vmatprep.mubr.f32.mxu0 0.0
    %439 = vmatmul.mubr.f32.gmra.mrb[0].mxu0 %v279
    %v440 = vpop.f32.mrb[0].mxu0
    %v441 = vadd.f32 %v302, %v440
    %v442 = vpop.f32.mrb[0].mxu0
    %443 = vmatprep.mubr.f32.mxu0 0.0
    %444 = vmatmul.mubr.f32.gmra.mrb[0].mxu0 %v280
    %v445 = vpop.f32.mrb[0].mxu0
    %v446 = vadd.f32 %v302, %v445
    %v447 = vpop.f32.mrb[0].mxu0
    %448 = vdwg.mxu0
    %v449 = vmax.f32 %v371, 0.0
    %v450 = vmax.f32 %v376, 0.0
    %v451 = vmax.f32 %v381, 0.0
    %v452 = vmax.f32 %v386, 0.0
    %v453 = vmax.f32 %v391, 0.0
    %v454 = vmax.f32 %v396, 0.0
    %v455 = vmax.f32 %v401, 0.0
    %v456 = vmax.f32 %v406, 0.0
    %v457 = vmax.f32 %v411, 0.0
    %v458 = vmax.f32 %v416, 0.0
    %v459 = vmax.f32 %v421, 0.0
    %v460 = vmax.f32 %v426, 0.0
    %v461 = vmax.f32 %v431, 0.0
    %v462 = vmax.f32 %v436, 0.0
    %v463 = vmax.f32 %v441, 0.0
    %v464 = vmax.f32 %v446, 0.0
    %465 = vst [vmem:[%s4] sm:$0xff] %v449
    %466 = vst [vmem:[%s4 + $0x8] sm:$0xff] %v450
    %467 = vst [vmem:[%s4 + $0x10] sm:$0xff] %v451
    %468 = vst [vmem:[%s4 + $0x18] sm:$0xff] %v452
    %469 = vst [vmem:[%s4 + $0x20] sm:$0xff] %v453
    %470 = vst [vmem:[%s4 + $0x28] sm:$0xff] %v454
    %471 = vst [vmem:[%s4 + $0x30] sm:$0xff] %v455
    %472 = vst [vmem:[%s4 + $0x38] sm:$0xff] %v456
    %473 = vst [vmem:[%s4 + $0x40] sm:$0xff] %v457
    %474 = vst [vmem:[%s4 + $0x48] sm:$0xff] %v458
    %475 = vst [vmem:[%s4 + $0x50] sm:$0xff] %v459
    %476 = vst [vmem:[%s4 + $0x58] sm:$0xff] %v460
    %477 = vst [vmem:[%s4 + $0x60] sm:$0xff] %v461
    %478 = vst [vmem:[%s4 + $0x68] sm:$0xff] %v462
    %479 = vst [vmem:[%s4 + $0x70] sm:$0xff] %v463
    %480 = vst [vmem:[%s4 + $0x78] sm:$0xff] %v464
  $region25: #{gcn_forward.2} parent=0 // pred_fallthru
    _
  // Predicated region
  $region26: #{gcn_forward.2} parent=0 // pred_check
    _
  $region27: #{gcn_forward.2} parent=0 // pred_check_branch
    %482 = sbr.rel (0) target = $region29
  $region28: #{gcn_forward.2} parent=0 // pred_region
    _
  $region29: #{gcn_forward.2} parent=0 // pred_fallthru
    _
  // Predicated region
  $region30: #{gcn_forward.2} parent=0 // pred_check
    _
  $region31: #{gcn_forward.2} parent=0 // pred_check_branch
    %484 = sbr.rel (0) target = $region33
  $region32: #{gcn_forward.2} parent=0 // pred_region
    _
  $region33: #{gcn_forward.2} parent=0 // pred_fallthru
    _

</llo_original>
